<compile_context>
chip_gen: v7x
topology: tpu7x:2x2x1
jax: 0.10.0
libtpu: 0.0.40
codegen_flags: <defaults>
</compile_context>

<pallas_src>
import jax
import jax.numpy as jnp
from jax.experimental import pallas as pl
from jax.experimental.pallas import tpu as pltpu

EPS = 1e-6

# Max pixels per tile: double-buffered HBM<->VMEM footprint is ~56 B/pixel
# (depth 4 + normals 12 + out 12 bytes, x2 buffers), so 128K pixels ~ 7.3 MiB,
# comfortably inside the 32 MiB scoped-VMEM budget on v5e/v6e/v7x while large
# enough (~3.7 MB of HBM traffic per step) to amortize the ~0.35 us/step cost.
_MAX_TILE_PIXELS = 128 * 1024


def _choose_tile(n_pix: int, max_tile: int) -> int:
    """Largest multiple-of-128 divisor of n_pix that is <= max_tile."""
    if n_pix <= max_tile:
        return n_pix                      # whole image per step (full-dim block is legal)
    best = None
    t = 128
    while t <= max_tile:
        if n_pix % t == 0:
            best = t
        t += 128
    if best is None:
        # TODO(synk): pad odd-sized images to a multiple of 128 pixels instead of
        # falling back to a whole-image block.
        return n_pix
    return best


def _make_phong_kernel(width: int, tile: int, shininess: float):
    shin_is_int = float(shininess).is_integer() and shininess >= 1.0
    shin_int = int(shininess) if shin_is_int else None
    w_pow2 = (width & (width - 1)) == 0

    def kernel(params_ref, depth_ref, normals_ref, out_ref):
        # scalar parameters (SMEM)
        inv_fx = params_ref[0]
        inv_fy = params_ref[1]
        cx = params_ref[2]
        cy = params_ref[3]
        att_k = params_ref[4]
        ambg = [params_ref[5 + c] for c in range(3)]    # ambient_color  * grey
        difg = [params_ref[8 + c] for c in range(3)]    # diffuse_color  * grey
        speg = [params_ref[11 + c] for c in range(3)]   # specular_color * grey

        d = depth_ref[0]                  # (1, T) depth
        n = normals_ref[0]                # (3, T) raw normals
        nx = n[0:1, :]
        ny = n[1:2, :]
        nz = n[2:3, :]

        # Pixel coordinates generated in-kernel from the flat pixel index
        # (removes 2*H*W*4 bytes of HBM read + two double-buffered VMEM inputs).
        lane = jax.lax.broadcasted_iota(jnp.int32, (1, tile), 1)
        idx = pl.program_id(1) * tile + lane
        if w_pow2:
            u = (idx & (width - 1)).astype(jnp.float32)                  # column (x)
            v = (idx >> (width.bit_length() - 1)).astype(jnp.float32)    # row    (y)
        else:
            idx_f = idx.astype(jnp.float32)
            v = jnp.floor((idx_f + 0.5) / float(width))
            u = idx_f - v * float(width)
            # TODO(synk): float div/floor path is exact for H*W < 2**23 pixels.

        # unproject_points: p = [(u-cx)/fx*d, (v-cy)/fy*d, d]
        px = (u - cx) * inv_fx * d
        py = (v - cy) * inv_fy * d
        pz = d

        # Light & camera both at the origin: light_dir == view_dir == normalize(-p)
        # and halfway == light_dir, so the specular cosine equals the diffuse one.
        # phong_lighting sees -normals, hence cos = relu((n . p) * inv|n| * inv|p|).
        pn2 = px * px + py * py + pz * pz
        p_norm = jnp.sqrt(pn2)
        inv_p = jax.lax.rsqrt(jnp.maximum(pn2, EPS * EPS))   # == 1/max(|p|,EPS)  (EUP)
        nn2 = nx * nx + ny * ny + nz * nz
        inv_n = jax.lax.rsqrt(jnp.maximum(nn2, EPS * EPS))   # == 1/max(|n|,EPS)  (EUP)

        dot_np = nx * px + ny * py + nz * pz
        cos_d = jnp.maximum(dot_np * (inv_n * inv_p), 0.0)

        # Specular exponent: static config value -> exponentiation by squaring on
        # the VPU (avoids exp/log on the single EUP port).
        if shin_is_int:
            spec = None
            base_v = cos_d
            e = shin_int
            while e > 0:
                if e & 1:
                    spec = base_v if spec is None else spec * base_v
                e >>= 1
                if e:
                    base_v = base_v * base_v
        else:
            spec = cos_d ** shininess     # static float exponent

        # Attenuation: denominator >= 1, a single exact divide per pixel (the
        # kernel is HBM-bandwidth bound, so it hides under the DMA roofline).
        att = jnp.clip(1.0 / (1.0 + att_k * p_norm), 0.0, 1.0)

        att_cd = att * cos_d
        att_sp = att * spec
        out_ref[0, 0:1, :] = att * ambg[0] + att_cd * difg[0] + att_sp * speg[0]
        out_ref[0, 1:2, :] = att * ambg[1] + att_cd * difg[1] + att_sp * speg[1]
        out_ref[0, 2:3, :] = att * ambg[2] + att_cd * difg[2] + att_sp * speg[2]

    return kernel


def phong_render_pallas(depth, normals, *, fx, fy, cx, cy,
                        ambient_color, diffusion_color, specular_color,
                        shininess, attenuation_factor, grey):
    # TODO(synk): assumes the intrinsics' original image size == image_size
    # (Squarify is identity); a resized pixel grid would need a scale/offset on u,v.
    B, _, H, W = depth.shape
    n_pix = H * W
    tile = _choose_tile(n_pix, _MAX_TILE_PIXELS)
    n_tiles = n_pix // tile

    d_flat = depth.reshape(B, 1, n_pix).astype(jnp.float32)   # contiguous reshape: free
    n_flat = normals.reshape(B, 3, n_pix).astype(jnp.float32)

    grey_f = jnp.float32(grey)
    params = jnp.concatenate([
        jnp.array([1.0 / fx, 1.0 / fy, cx, cy, attenuation_factor], jnp.float32),
        jnp.asarray(ambient_color, jnp.float32) * grey_f,
        jnp.asarray(diffusion_color, jnp.float32) * grey_f,
        jnp.asarray(specular_color, jnp.float32) * grey_f,
    ])                                                        # (14,)

    kernel = _make_phong_kernel(width=W, tile=tile, shininess=float(shininess))

    out_flat = pl.pallas_call(
        kernel,
        out_shape=jax.ShapeDtypeStruct((B, 3, n_pix), jnp.float32),
        grid=(B, n_tiles),
        in_specs=[
            pl.BlockSpec(memory_space=pltpu.MemorySpace.SMEM),       # params (14,)
            pl.BlockSpec((1, 1, tile), lambda b, t: (b, 0, t)),      # depth
            pl.BlockSpec((1, 3, tile), lambda b, t: (b, 0, t)),      # normals
        ],
        out_specs=pl.BlockSpec((1, 3, tile), lambda b, t: (b, 0, t)),
        compiler_params=pltpu.CompilerParams(
            dimension_semantics=("parallel", "parallel"),
            vmem_limit_bytes=32 * 1024 * 1024),
    )(params, d_flat, n_flat)
    return out_flat.reshape(B, 3, H, W)


def phong_reference(depth, normals, fx, fy, cx, cy,
                    amb, dif, spe, shininess, att_factor, grey):
    """Pure-JAX reference mirroring render_rgbd / phong_lighting / blinn_specular."""
    B, _, H, W = depth.shape
    cols = jnp.arange(W, dtype=jnp.float32)
    rows = jnp.arange(H, dtype=jnp.float32)
    pix_x = jnp.broadcast_to(cols[None, :], (H, W))
    pix_y = jnp.broadcast_to(rows[:, None], (H, W))
    d = depth[:, 0]                                        # (B,H,W)
    px = (pix_x[None] - cx) / fx * d
    py = (pix_y[None] - cy) / fy * d
    p = jnp.stack([px, py, d], axis=-1)                    # (B,H,W,3)
    n = -jnp.transpose(normals, (0, 2, 3, 1))              # (B,H,W,3)
    nh = n / jnp.maximum(jnp.linalg.norm(n, axis=-1, keepdims=True), EPS)
    p_norm = jnp.linalg.norm(p, axis=-1, keepdims=True)
    dh = -p / jnp.maximum(p_norm, EPS)
    h = dh + dh
    hh = h / jnp.maximum(jnp.linalg.norm(h, axis=-1, keepdims=True), EPS)
    cos_d = jnp.maximum(jnp.sum(nh * dh, -1), 0.0)
    cos_s = jnp.maximum(jnp.sum(nh * hh, -1), 0.0)
    spec_a = jnp.power(cos_s, shininess)
    att = jnp.clip(1.0 / (1.0 + att_factor * p_norm[..., 0]), 0.0, 1.0)
    colors = (amb[None, None, None]
              + dif[None, None, None] * cos_d[..., None]
              + spe[None, None, None] * spec_a[..., None]) * grey
    out = att[..., None] * colors
    return jnp.transpose(out, (0, 3, 1, 2))


if __name__ == "__main__":
    # ---- deterministic "PhongConfig" setup (no checkpoint) ----
    B, image_size = 2, 16
    H = W = image_size
    fx, fy = 20.0, 20.0
    cx, cy = image_size / 2.0, image_size / 2.0            # Squarify identity
    ambient_color = jnp.array([0.20, 0.25, 0.30], jnp.float32)
    diffusion_color = jnp.array([0.60, 0.55, 0.50], jnp.float32)
    specular_color = jnp.array([0.30, 0.30, 0.35], jnp.float32)
    material_shininess = 32.0
    attenuation_factor = 0.01
    grey_value = 0.5                                        # self.grey = ones * 0.5

    # ---- inputs ----
    key = jax.random.PRNGKey(0)
    k1, k2 = jax.random.split(key)
    depth = jax.random.uniform(k1, (B, 1, H, W), jnp.float32, minval=0.5, maxval=5.0)
    normals = jax.random.normal(k2, (B, 3, H, W), jnp.float32)
    normals = normals / jnp.linalg.norm(normals, axis=1, keepdims=True)

    # ---- run kernel ----
    out = phong_render_pallas(
        depth, normals, fx=fx, fy=fy, cx=cx, cy=cy,
        ambient_color=ambient_color, diffusion_color=diffusion_color,
        specular_color=specular_color, shininess=material_shininess,
        attenuation_factor=attenuation_factor, grey=grey_value)
    out = jax.block_until_ready(out)

    # ---- verify against pure-JAX reference ----
    ref = phong_reference(depth, normals, fx, fy, cx, cy,
                          ambient_color, diffusion_color, specular_color,
                          material_shininess, attenuation_factor, grey_value)
    ref = jax.block_until_ready(ref)
    assert out.shape == (B, 3, H, W)
    assert jnp.allclose(out, ref, atol=1e-5, rtol=1e-4), "mismatch vs reference"

    print("KERNEL_OK")
</pallas_src>

<mosaic_0001>
module attributes {stable_mosaic.version = 11 : i64} {
  func.func @kernel(%arg0: i32, %arg1: i32, %arg2: memref<14xf32, #tpu.memory_space<smem>>, %arg3: memref<1x1x256xf32, #tpu.memory_space<vmem>>, %arg4: memref<1x3x256xf32, #tpu.memory_space<vmem>>, %arg5: memref<1x3x256xf32, #tpu.memory_space<vmem>>) attributes {dimension_semantics = [#tpu.dimension_semantics<parallel>, #tpu.dimension_semantics<parallel>], iteration_bounds = array<i64: 2, 1>, scalar_prefetch = 0 : i64, scratch_operands = 0 : i64, tpu.core_type = #tpu.core_type<tc>, window_params = [{transform_indices = @transform_0, window_bounds = array<i64: 14>}, {transform_indices = @transform_1, window_bounds = array<i64: 1, 1, 256>}, {transform_indices = @transform_2, window_bounds = array<i64: 1, 3, 256>}, {transform_indices = @transform_3, window_bounds = array<i64: 1, 3, 256>}]} {
    %c0 = arith.constant 0 : index
    %0 = memref.load %arg2[%c0] : memref<14xf32, #tpu.memory_space<smem>>
    %c1 = arith.constant 1 : index
    %1 = memref.load %arg2[%c1] : memref<14xf32, #tpu.memory_space<smem>>
    %c2 = arith.constant 2 : index
    %2 = memref.load %arg2[%c2] : memref<14xf32, #tpu.memory_space<smem>>
    %c3 = arith.constant 3 : index
    %3 = memref.load %arg2[%c3] : memref<14xf32, #tpu.memory_space<smem>>
    %c4 = arith.constant 4 : index
    %4 = memref.load %arg2[%c4] : memref<14xf32, #tpu.memory_space<smem>>
    %c5 = arith.constant 5 : index
    %5 = memref.load %arg2[%c5] : memref<14xf32, #tpu.memory_space<smem>>
    %c6 = arith.constant 6 : index
    %6 = memref.load %arg2[%c6] : memref<14xf32, #tpu.memory_space<smem>>
    %c7 = arith.constant 7 : index
    %7 = memref.load %arg2[%c7] : memref<14xf32, #tpu.memory_space<smem>>
    %c8 = arith.constant 8 : index
    %8 = memref.load %arg2[%c8] : memref<14xf32, #tpu.memory_space<smem>>
    %c9 = arith.constant 9 : index
    %9 = memref.load %arg2[%c9] : memref<14xf32, #tpu.memory_space<smem>>
    %c10 = arith.constant 10 : index
    %10 = memref.load %arg2[%c10] : memref<14xf32, #tpu.memory_space<smem>>
    %c11 = arith.constant 11 : index
    %11 = memref.load %arg2[%c11] : memref<14xf32, #tpu.memory_space<smem>>
    %c12 = arith.constant 12 : index
    %12 = memref.load %arg2[%c12] : memref<14xf32, #tpu.memory_space<smem>>
    %c13 = arith.constant 13 : index
    %13 = memref.load %arg2[%c13] : memref<14xf32, #tpu.memory_space<smem>>
    %c0_0 = arith.constant 0 : index
    %c0_1 = arith.constant 0 : index
    %c0_2 = arith.constant 0 : index
    %14 = vector.load %arg3[%c0_0, %c0_1, %c0_2] : memref<1x1x256xf32, #tpu.memory_space<vmem>>, vector<1x1x256xf32>
    %15 = vector.shape_cast %14 : vector<1x1x256xf32> to vector<1x256xf32>
    %c0_3 = arith.constant 0 : index
    %c0_4 = arith.constant 0 : index
    %c0_5 = arith.constant 0 : index
    %16 = vector.load %arg4[%c0_3, %c0_4, %c0_5] : memref<1x3x256xf32, #tpu.memory_space<vmem>>, vector<1x3x256xf32>
    %17 = vector.shape_cast %16 : vector<1x3x256xf32> to vector<3x256xf32>
    %18 = vector.extract_strided_slice %17 {offsets = [0, 0], sizes = [1, 256], strides = [1, 1]} : vector<3x256xf32> to vector<1x256xf32>
    %19 = vector.extract_strided_slice %17 {offsets = [1, 0], sizes = [1, 256], strides = [1, 1]} : vector<3x256xf32> to vector<1x256xf32>
    %20 = vector.extract_strided_slice %17 {offsets = [2, 0], sizes = [1, 256], strides = [1, 1]} : vector<3x256xf32> to vector<1x256xf32>
    %21 = tpu.iota {dimensions = array<i32: 1>} : vector<1x256xi32>
    %c256_i32 = arith.constant 256 : i32
    %22 = arith.muli %arg1, %c256_i32 : i32
    %23 = vector.broadcast %22 : i32 to vector<1x256xi32>
    %24 = arith.addi %23, %21 : vector<1x256xi32>
    %c15_i32 = arith.constant 15 : i32
    %25 = vector.broadcast %c15_i32 : i32 to vector<1x256xi32>
    %26 = arith.andi %24, %25 : vector<1x256xi32>
    %27 = arith.sitofp %26 : vector<1x256xi32> to vector<1x256xf32>
    %c4_i32 = arith.constant 4 : i32
    %28 = vector.broadcast %c4_i32 : i32 to vector<1x256xi32>
    %29 = arith.shrsi %24, %28 : vector<1x256xi32>
    %30 = arith.sitofp %29 : vector<1x256xi32> to vector<1x256xf32>
    %31 = vector.broadcast %2 : f32 to vector<1x256xf32>
    %32 = arith.subf %27, %31 : vector<1x256xf32>
    %33 = vector.broadcast %0 : f32 to vector<1x256xf32>
    %34 = arith.mulf %32, %33 : vector<1x256xf32>
    %35 = arith.mulf %34, %15 : vector<1x256xf32>
    %36 = vector.broadcast %3 : f32 to vector<1x256xf32>
    %37 = arith.subf %30, %36 : vector<1x256xf32>
    %38 = vector.broadcast %1 : f32 to vector<1x256xf32>
    %39 = arith.mulf %37, %38 : vector<1x256xf32>
    %40 = arith.mulf %39, %15 : vector<1x256xf32>
    %41 = arith.mulf %35, %35 : vector<1x256xf32>
    %42 = arith.mulf %40, %40 : vector<1x256xf32>
    %43 = arith.addf %41, %42 : vector<1x256xf32>
    %44 = arith.mulf %15, %15 : vector<1x256xf32>
    %45 = arith.addf %43, %44 : vector<1x256xf32>
    %46 = math.sqrt %45 : vector<1x256xf32>
    %cst = arith.constant 9.99999996E-13 : f32
    %47 = vector.broadcast %cst : f32 to vector<1x256xf32>
    %48 = arith.maximumf %45, %47 : vector<1x256xf32>
    %49 = math.rsqrt %48 : vector<1x256xf32>
    %50 = arith.mulf %18, %18 : vector<1x256xf32>
    %51 = arith.mulf %19, %19 : vector<1x256xf32>
    %52 = arith.addf %50, %51 : vector<1x256xf32>
    %53 = arith.mulf %20, %20 : vector<1x256xf32>
    %54 = arith.addf %52, %53 : vector<1x256xf32>
    %cst_6 = arith.constant 9.99999996E-13 : f32
    %55 = vector.broadcast %cst_6 : f32 to vector<1x256xf32>
    %56 = arith.maximumf %54, %55 : vector<1x256xf32>
    %57 = math.rsqrt %56 : vector<1x256xf32>
    %58 = arith.mulf %18, %35 : vector<1x256xf32>
    %59 = arith.mulf %19, %40 : vector<1x256xf32>
    %60 = arith.addf %58, %59 : vector<1x256xf32>
    %61 = arith.mulf %20, %15 : vector<1x256xf32>
    %62 = arith.addf %60, %61 : vector<1x256xf32>
    %63 = arith.mulf %57, %49 : vector<1x256xf32>
    %64 = arith.mulf %62, %63 : vector<1x256xf32>
    %cst_7 = arith.constant 0.000000e+00 : f32
    %65 = vector.broadcast %cst_7 : f32 to vector<1x256xf32>
    %66 = arith.maximumf %64, %65 : vector<1x256xf32>
    %67 = arith.mulf %66, %66 : vector<1x256xf32>
    %68 = arith.mulf %67, %67 : vector<1x256xf32>
    %69 = arith.mulf %68, %68 : vector<1x256xf32>
    %70 = arith.mulf %69, %69 : vector<1x256xf32>
    %71 = arith.mulf %70, %70 : vector<1x256xf32>
    %72 = vector.broadcast %4 : f32 to vector<1x256xf32>
    %73 = arith.mulf %72, %46 : vector<1x256xf32>
    %cst_8 = arith.constant 1.000000e+00 : f32
    %74 = vector.broadcast %cst_8 : f32 to vector<1x256xf32>
    %75 = arith.addf %74, %73 : vector<1x256xf32>
    %cst_9 = arith.constant 1.000000e+00 : f32
    %76 = vector.broadcast %cst_9 : f32 to vector<1x256xf32>
    %77 = arith.divf %76, %75 : vector<1x256xf32>
    %cst_10 = arith.constant 0.000000e+00 : f32
    %cst_11 = arith.constant 1.000000e+00 : f32
    %78 = vector.broadcast %cst_10 : f32 to vector<1x256xf32>
    %79 = arith.maximumf %78, %77 : vector<1x256xf32>
    %80 = vector.broadcast %cst_11 : f32 to vector<1x256xf32>
    %81 = arith.minimumf %80, %79 : vector<1x256xf32>
    %82 = arith.mulf %81, %66 : vector<1x256xf32>
    %83 = arith.mulf %81, %71 : vector<1x256xf32>
    %84 = vector.broadcast %5 : f32 to vector<1x256xf32>
    %85 = arith.mulf %81, %84 : vector<1x256xf32>
    %86 = vector.broadcast %8 : f32 to vector<1x256xf32>
    %87 = arith.mulf %82, %86 : vector<1x256xf32>
    %88 = arith.addf %85, %87 : vector<1x256xf32>
    %89 = vector.broadcast %11 : f32 to vector<1x256xf32>
    %90 = arith.mulf %83, %89 : vector<1x256xf32>
    %91 = arith.addf %88, %90 : vector<1x256xf32>
    %c0_12 = arith.constant 0 : index
    %c0_13 = arith.constant 0 : index
    %c0_14 = arith.constant 0 : index
    %92 = vector.load %arg5[%c0_12, %c0_13, %c0_14] : memref<1x3x256xf32, #tpu.memory_space<vmem>>, vector<1x1x256xf32>
    %93 = vector.shape_cast %92 : vector<1x1x256xf32> to vector<1x256xf32>
    %94 = vector.shape_cast %91 : vector<1x256xf32> to vector<1x1x256xf32>
    tpu.vector_store %arg5[%c0_12, %c0_13, %c0_14], %94 {strides = array<i32>} : memref<1x3x256xf32, #tpu.memory_space<vmem>>, vector<1x1x256xf32>,
    %95 = vector.broadcast %6 : f32 to vector<1x256xf32>
    %96 = arith.mulf %81, %95 : vector<1x256xf32>
    %97 = vector.broadcast %9 : f32 to vector<1x256xf32>
    %98 = arith.mulf %82, %97 : vector<1x256xf32>
    %99 = arith.addf %96, %98 : vector<1x256xf32>
    %100 = vector.broadcast %12 : f32 to vector<1x256xf32>
    %101 = arith.mulf %83, %100 : vector<1x256xf32>
    %102 = arith.addf %99, %101 : vector<1x256xf32>
    %c0_15 = arith.constant 0 : index
    %c1_16 = arith.constant 1 : index
    %c0_17 = arith.constant 0 : index
    %103 = vector.load %arg5[%c0_15, %c1_16, %c0_17] : memref<1x3x256xf32, #tpu.memory_space<vmem>>, vector<1x1x256xf32>
    %104 = vector.shape_cast %103 : vector<1x1x256xf32> to vector<1x256xf32>
    %105 = vector.shape_cast %102 : vector<1x256xf32> to vector<1x1x256xf32>
    tpu.vector_store %arg5[%c0_15, %c1_16, %c0_17], %105 {strides = array<i32>} : memref<1x3x256xf32, #tpu.memory_space<vmem>>, vector<1x1x256xf32>,
    %106 = vector.broadcast %7 : f32 to vector<1x256xf32>
    %107 = arith.mulf %81, %106 : vector<1x256xf32>
    %108 = vector.broadcast %10 : f32 to vector<1x256xf32>
    %109 = arith.mulf %82, %108 : vector<1x256xf32>
    %110 = arith.addf %107, %109 : vector<1x256xf32>
    %111 = vector.broadcast %13 : f32 to vector<1x256xf32>
    %112 = arith.mulf %83, %111 : vector<1x256xf32>
    %113 = arith.addf %110, %112 : vector<1x256xf32>
    %c0_18 = arith.constant 0 : index
    %c2_19 = arith.constant 2 : index
    %c0_20 = arith.constant 0 : index
    %114 = vector.load %arg5[%c0_18, %c2_19, %c0_20] : memref<1x3x256xf32, #tpu.memory_space<vmem>>, vector<1x1x256xf32>
    %115 = vector.shape_cast %114 : vector<1x1x256xf32> to vector<1x256xf32>
    %116 = vector.shape_cast %113 : vector<1x256xf32> to vector<1x1x256xf32>
    tpu.vector_store %arg5[%c0_18, %c2_19, %c0_20], %116 {strides = array<i32>} : memref<1x3x256xf32, #tpu.memory_space<vmem>>, vector<1x1x256xf32>,
    return
  }
  func.func @transform_0(%arg0: i32, %arg1: i32) -> i32 {
    %c0_i32 = arith.constant 0 : i32
    %c0_i32_0 = arith.constant 0 : i32
    return %c0_i32 : i32
  }
  func.func @transform_1(%arg0: i32, %arg1: i32) -> (i32, i32, i32) {
    %c0_i32 = arith.constant 0 : i32
    %c0_i32_0 = arith.constant 0 : i32
    return %arg0, %c0_i32, %arg1 : i32, i32, i32
  }
  func.func @transform_2(%arg0: i32, %arg1: i32) -> (i32, i32, i32) {
    %c0_i32 = arith.constant 0 : i32
    %c0_i32_0 = arith.constant 0 : i32
    return %arg0, %c0_i32, %arg1 : i32, i32, i32
  }
  func.func @transform_3(%arg0: i32, %arg1: i32) -> (i32, i32, i32) {
    %c0_i32 = arith.constant 0 : i32
    %c0_i32_0 = arith.constant 0 : i32
    return %arg0, %c0_i32, %arg1 : i32, i32, i32
  }
}

</mosaic_0001>

<llo_original>
// kernel: tpu_custom_call.1
$region0: #{tpu_custom_call.1}
  #allocation0 [shape = 'u32[]', space=smem, size = 0x4, offset = 0x4, fixed_abs, tag = 'smem constant byte address 0x4 - core index']
  #allocation1 [shape = 'u32[144,128]{1,0:T(1,128)}', space=vmem, size = 0x12000, scoped, tag = 'internal scratch']
  %s0 = inlined_call_operand.vmem [shape: f32[14], index: 0, kind: input, shape index: {}]
  %s1 = inlined_call_operand.vmem [shape: f32[2,1,256], index: 1, kind: input, shape index: {}]
  %s2 = inlined_call_operand.vmem [shape: f32[2,3,256], index: 2, kind: input, shape index: {}]
  %s3 = inlined_call_operand.vmem [shape: f32[2,3,256], index: 3, kind: output, shape index: {}]
  %s4 = sld [smem:[#allocation0]]
  $region49: #{tpu_custom_call.1} parent=0
    _
  %s6 = ssub.s32 1, %s4
  %s7 = scalar_select 0, %s6, %s4
  $region1: #{tpu_custom_call.1} parent=0
    #allocation2 [shape = 'u8[512]{0}', space=smem, size = 0x200, scoped, tag = 'input window, operand 0, single buffered']
    #allocation3 [shape = 's32[2]{0}', space=sflag, size = 0x8, scoped, tag = 'scoped memory for tpu_custom_call.1']
    %8 = vsyncpa [#allocation3], 0
    loop: start=0, step=1, limit=4
    $region2: #{tpu_custom_call.1} parent=1 // loop_pre_header
      _
    $region3: #{tpu_custom_call.1} parent=1 // loop_header
      %s10 = sphi 0, %s14
      %p11 = scmp.ge.s32.totalorder %s10, 4
      %s17 = sphi 0, %s29
      %s18 = sphi 0, %s25
      %s19 = sphi 0, %s17
      %s20 = sphi 0, %s18
      %s21 = sphi 0, %s19
      %s22 = sphi 0, %s20
      %s30 = sphi 0, %s30
      %s32 = sphi 0, %s30
      %s33 = sphi 0, %s32
      %s47 = sphi 0, %s33
      %s55 = sphi 0, %s57
      %s58 = sphi 0, %s55
      %s59 = sphi 0, %s58
      %s75 = sphi 0, %s59
      %s83 = sphi 0, %s85
      %s86 = sphi 0, %s83
      %s87 = sphi 0, %s86
      %s103 = sphi 0, %s87
      %s111 = sphi 0, %s113
      %s114 = sphi 0, %s111
      %s115 = sphi 0, %s114
      %s131 = sphi 0, %s115
    $region4: #{tpu_custom_call.1} parent=1 // loop_header_branch
      %13 = sbr.rel (%p11) target = $region8
    $region5: #{tpu_custom_call.1} parent=1 // loop_body
      %s15 = ssub.s32 %s10, 1
      %s16 = ssub.s32 %s10, 2
      %s23 = sadd.s32 1, %s18
      %p24 = scmp.ge.s32.totalorder %s23, 1
      %s25 = scalar_select %p24, 0, %s23
      %s26 = sadd.s32 1, %s17
      %s27 = scalar_select %p24, %s26, %s17
      %p28 = scmp.ge.s32.totalorder %s27, 2
      %s29 = scalar_select %p28, 0, %s27
      %s31 = sadd.s32 %s30, 1
      %p34 = scmp.eq.s32.totalorder %s10, 1
      %p35 = scmp.ne.s32.totalorder %s30, %s32
      %p36 = scmp.eq.s32.totalorder %s10, 0
      %p37 = por %p35, %p36
      %p38 = scmp.ne.s32.totalorder %s30, %s32
      %p39 = scmp.eq.s32.totalorder %s15, 1
      %p40 = por %p38, %p39
      %p41 = scmp.ne.s32.totalorder %s32, %s33
      %p42 = scmp.eq.s32.totalorder %s15, 0
      %p43 = por %p41, %p42
      %p44 = scmp.ne.s32.totalorder %s32, %s33
      %p45 = scmp.eq.s32.totalorder %s16, 1
      %p46 = por %p44, %p45
      %p48 = scmp.ne.s32.totalorder %s33, %s47
      %p49 = scmp.eq.s32.totalorder %s16, 0
      %p50 = por %p48, %p49
      %s51 = ssub.s32 %s17, %s29
      %s52 = ssub.s32 %s18, %s25
      %s53 = sor.u32 %s51, %s52
      %p54 = scmp.eq.s32.totalorder %s53, 0
      %s56 = sadd.s32 %s55, 1
      %s57 = scalar_select %p54, %s55, %s56
      %p60 = pneg %p54
      %p61 = scmp.eq.s32.totalorder %s10, 1
      %p62 = por %p60, %p61
      %p63 = scmp.ne.s32.totalorder %s55, %s58
      %p64 = scmp.eq.s32.totalorder %s10, 0
      %p65 = por %p63, %p64
      %p66 = scmp.ne.s32.totalorder %s55, %s58
      %p67 = scmp.eq.s32.totalorder %s15, 1
      %p68 = por %p66, %p67
      %p69 = scmp.ne.s32.totalorder %s58, %s59
      %p70 = scmp.eq.s32.totalorder %s15, 0
      %p71 = por %p69, %p70
      %p72 = scmp.ne.s32.totalorder %s58, %s59
      %p73 = scmp.eq.s32.totalorder %s16, 1
      %p74 = por %p72, %p73
      %p76 = scmp.ne.s32.totalorder %s59, %s75
      %p77 = scmp.eq.s32.totalorder %s16, 0
      %p78 = por %p76, %p77
      %s79 = ssub.s32 %s17, %s29
      %s80 = ssub.s32 %s18, %s25
      %s81 = sor.u32 %s79, %s80
      %p82 = scmp.eq.s32.totalorder %s81, 0
      %s84 = sadd.s32 %s83, 1
      %s85 = scalar_select %p82, %s83, %s84
      %p88 = pneg %p82
      %p89 = scmp.eq.s32.totalorder %s10, 1
      %p90 = por %p88, %p89
      %p91 = scmp.ne.s32.totalorder %s83, %s86
      %p92 = scmp.eq.s32.totalorder %s10, 0
      %p93 = por %p91, %p92
      %p94 = scmp.ne.s32.totalorder %s83, %s86
      %p95 = scmp.eq.s32.totalorder %s15, 1
      %p96 = por %p94, %p95
      %p97 = scmp.ne.s32.totalorder %s86, %s87
      %p98 = scmp.eq.s32.totalorder %s15, 0
      %p99 = por %p97, %p98
      %p100 = scmp.ne.s32.totalorder %s86, %s87
      %p101 = scmp.eq.s32.totalorder %s16, 1
      %p102 = por %p100, %p101
      %p104 = scmp.ne.s32.totalorder %s87, %s103
      %p105 = scmp.eq.s32.totalorder %s16, 0
      %p106 = por %p104, %p105
      %s107 = ssub.s32 %s17, %s29
      %s108 = ssub.s32 %s18, %s25
      %s109 = sor.u32 %s107, %s108
      %p110 = scmp.eq.s32.totalorder %s109, 0
      %s112 = sadd.s32 %s111, 1
      %s113 = scalar_select %p110, %s111, %s112
      %p116 = pneg %p110
      %p117 = scmp.eq.s32.totalorder %s10, 1
      %p118 = por %p116, %p117
      %p119 = scmp.ne.s32.totalorder %s111, %s114
      %p120 = scmp.eq.s32.totalorder %s10, 0
      %p121 = por %p119, %p120
      %p122 = scmp.ne.s32.totalorder %s111, %s114
      %p123 = scmp.eq.s32.totalorder %s15, 1
      %p124 = por %p122, %p123
      %p125 = scmp.ne.s32.totalorder %s114, %s115
      %p126 = scmp.eq.s32.totalorder %s15, 0
      %p127 = por %p125, %p126
      %p128 = scmp.ne.s32.totalorder %s114, %s115
      %p129 = scmp.eq.s32.totalorder %s16, 1
      %p130 = por %p128, %p129
      %p132 = scmp.ne.s32.totalorder %s115, %s131
      %p133 = scmp.eq.s32.totalorder %s16, 0
      %p134 = por %p132, %p133
      %p135 = scmp.le.s32.totalorder 1, %s10
      %p136 = scmp.lt.s32.totalorder %s10, 3
      %p137 = pnand %p135, %p136
      %p138 = pneg %p137
      // Predicated region
      $region9: #{tpu_custom_call.1} parent=5 // pred_check
        _
      $region10: #{tpu_custom_call.1} parent=5 // pred_check_branch
        %140 = sbr.rel (%p137) target = $region12
      $region11: #{tpu_custom_call.1} parent=5 // pred_region
        %s141 = ssub.s32 %s10, 1
        // Predicated region
        $region13: #{tpu_custom_call.1} parent=11 // pred_check
          %p142 = pneg %p43
        $region14: #{tpu_custom_call.1} parent=11 // pred_check_branch
          %144 = sbr.rel (%p142) target = $region16
        $region15: #{tpu_custom_call.1} parent=11 // pred_region
          %s146 = ssub.s32 16, 16
          %147 = vsyncadd [#allocation3], %s146
          %s149 = sshll.u32 %s0, 4
          %s150 = int_to_ptr.vmem [resolvable:$true] %s149
          %152 = dma.vmem_to_smem %s150, 16, [#allocation2], [#allocation3]
        $region16: #{tpu_custom_call.1} parent=11 // pred_fallthru
          _
      $region12: #{tpu_custom_call.1} parent=5 // pred_fallthru
        _
      %p153 = scmp.lt.s32.totalorder %s10, 2
      // Predicated region
      $region17: #{tpu_custom_call.1} parent=5 // pred_check
        %p154 = pneg %p153
      $region18: #{tpu_custom_call.1} parent=5 // pred_check_branch
        %156 = sbr.rel (%p154) target = $region20
      $region19: #{tpu_custom_call.1} parent=5 // pred_region
        // Predicated region
        $region21: #{tpu_custom_call.1} parent=19 // pred_check
          %p157 = pneg %p65
        $region22: #{tpu_custom_call.1} parent=19 // pred_check_branch
          %159 = sbr.rel (%p157) target = $region24
        $region23: #{tpu_custom_call.1} parent=19 // pred_region
          %s160 = smul.u32 2, %s18
          %p161 = scmp.lt.s32.totalorder %s17, 1
          %s162 = scalar_select %p161, %s17, 1
          %p163 = scmp.lt.s32.totalorder %s160, 1
          %s164 = scalar_select %p163, %s160, 1
          %s165 = smul.addr %s162, 2
          %s166 = sadd.s32 %s164, %s165
          %s167 = scalar_lea.vmem %s1, %s166
          %s168 = smul.u32 2, %s18
        $region24: #{tpu_custom_call.1} parent=19 // pred_fallthru
          _
        // Predicated region
        $region25: #{tpu_custom_call.1} parent=19 // pred_check
          %p169 = pneg %p93
        $region26: #{tpu_custom_call.1} parent=19 // pred_check_branch
          %171 = sbr.rel (%p169) target = $region28
        $region27: #{tpu_custom_call.1} parent=19 // pred_region
          %s172 = smul.u32 2, %s18
          %p173 = scmp.lt.s32.totalorder %s17, 1
          %s174 = scalar_select %p173, %s17, 1
          %p175 = scmp.lt.s32.totalorder %s172, 1
          %s176 = scalar_select %p175, %s172, 1
          %s177 = smul.addr %s174, 2
          %s178 = sadd.s32 %s176, %s177
          %s179 = smul.addr %s178, 4
          %s180 = scalar_lea.vmem %s2, %s179
          %s181 = smul.u32 2, %s18
        $region28: #{tpu_custom_call.1} parent=19 // pred_fallthru
          _
      $region20: #{tpu_custom_call.1} parent=5 // pred_fallthru
        _
      %p182 = scmp.le.s32.totalorder 1, %s10
      %p183 = scmp.lt.s32.totalorder %s10, 3
      %p184 = pnand %p182, %p183
      %p185 = pneg %p184
      // Predicated region
      $region29: #{tpu_custom_call.1} parent=5 // pred_check
        _
      $region30: #{tpu_custom_call.1} parent=5 // pred_check_branch
        %187 = sbr.rel (%p184) target = $region32
      $region31: #{tpu_custom_call.1} parent=5 // pred_region
        %s188 = ssub.s32 %s10, 1
        // Predicated region
        $region33: #{tpu_custom_call.1} parent=31 // pred_check
          %p189 = pneg %p43
        $region34: #{tpu_custom_call.1} parent=31 // pred_check_branch
          %191 = sbr.rel (%p189) target = $region36
        $region35: #{tpu_custom_call.1} parent=31 // pred_region
          %192 = dma.done [#allocation3], 16
        $region36: #{tpu_custom_call.1} parent=31 // pred_fallthru
          _
        %193 = sfence
        %p194 = pneg %p43
        %p195 = pneg %p40
        %s196 = smul.u32 2, %s20
        %p197 = scmp.lt.s32.totalorder %s19, 1
        %s198 = scalar_select %p197, %s19, 1
        %p199 = scmp.lt.s32.totalorder %s196, 1
        %s200 = scalar_select %p199, %s196, 1
        %s201 = smul.addr %s198, 2
        %s202 = sadd.s32 %s200, %s201
        %s203 = scalar_lea.vmem %s1, %s202
        %p204 = pneg %p71
        %p205 = pneg %p68
        %s206 = smul.u32 2, %s20
        %p207 = scmp.lt.s32.totalorder %s19, 1
        %s208 = scalar_select %p207, %s19, 1
        %p209 = scmp.lt.s32.totalorder %s206, 1
        %s210 = scalar_select %p209, %s206, 1
        %s211 = smul.addr %s208, 2
        %s212 = sadd.s32 %s210, %s211
        %s213 = smul.addr %s212, 4
        %s214 = scalar_lea.vmem %s2, %s213
        %p215 = pneg %p99
        %p216 = pneg %p96
        %p217 = pneg %p127
        %p218 = pneg %p124
        %s219 = smul.u32 2, %s20
        %p220 = scmp.lt.s32.totalorder %s19, 1
        %s221 = scalar_select %p220, %s19, 1
        %p222 = scmp.lt.s32.totalorder %s219, 1
        %s223 = scalar_select %p222, %s219, 1
        %s224 = smul.addr %s221, 2
        %s225 = sadd.s32 %s223, %s224
        %s226 = smul.addr %s225, 4
        %s227 = scalar_lea.vmem %s3, %s226
        %s228 = smul.u32 2, %s20
        %p229 = scmp.lt.s32.totalorder %s19, 1
        %s230 = scalar_select %p229, %s19, 1
        %p231 = scmp.lt.s32.totalorder %s228, 1
        %s232 = scalar_select %p231, %s228, 1
        %s233 = smul.addr %s230, 2
        %s234 = sadd.s32 %s232, %s233
        %s235 = scalar_lea.vmem %s1, %s234
        %s236 = smul.u32 2, %s20
        %s237 = smul.u32 2, %s20
        %p238 = scmp.lt.s32.totalorder %s19, 1
        %s239 = scalar_select %p238, %s19, 1
        %p240 = scmp.lt.s32.totalorder %s237, 1
        %s241 = scalar_select %p240, %s237, 1
        %s242 = smul.addr %s239, 2
        %s243 = sadd.s32 %s241, %s242
        %s244 = smul.addr %s243, 4
        %s245 = scalar_lea.vmem %s2, %s244
        %s246 = smul.u32 2, %s20
        %s247 = smul.u32 2, %s20
        %p248 = scmp.lt.s32.totalorder %s19, 1
        %s249 = scalar_select %p248, %s19, 1
        %p250 = scmp.lt.s32.totalorder %s247, 1
        %s251 = scalar_select %p250, %s247, 1
        %s252 = smul.addr %s249, 2
        %s253 = sadd.s32 %s251, %s252
        %s254 = smul.addr %s253, 4
        %s255 = scalar_lea.vmem %s3, %s254
        %s256 = smul.u32 2, %s20
        %s257 = sld [smem:[#allocation2]]
        %s258 = sld [smem:[#allocation2 + $0x1]]
        %s259 = sld [smem:[#allocation2 + $0x2]]
        %s260 = sld [smem:[#allocation2 + $0x3]]
        %s261 = sld [smem:[#allocation2 + $0x4]]
        %s262 = sld [smem:[#allocation2 + $0x5]]
        %s263 = sld [smem:[#allocation2 + $0x6]]
        %s264 = sld [smem:[#allocation2 + $0x7]]
        %s265 = sld [smem:[#allocation2 + $0x8]]
        %s266 = sld [smem:[#allocation2 + $0x9]]
        %s267 = sld [smem:[#allocation2 + $0xa]]
        %s268 = sld [smem:[#allocation2 + $0xb]]
        %s269 = sld [smem:[#allocation2 + $0xc]]
        %s270 = sld [smem:[#allocation2 + $0xd]]
        %v271 = vld [vmem:[%s235] sm:$0x3]
        %v272 = vld [vmem:[%s245] sm:$0x77]
        %v273 = vlaneseq
        %v274 = vand.u32 %v273, 127
        %v275 = vadd.s32 %v274, 128
        %s276 = smul.u32 %s20, 256
        %v277 = vstv %s276
        %v278 = vadd.s32 %v277, %v274
        %v279 = vadd.s32 %v277, %v275
        %v280 = vand.u32 %v278, 15
        %v281 = vand.u32 %v279, 15
        %v282 = vcvt.s32.f32 %v280
        %v283 = vcvt.s32.f32 %v281
        %v284 = vshra.s32 %v278, 4
        %v285 = vshra.s32 %v279, 4
        %v286 = vcvt.s32.f32 %v284
        %v287 = vcvt.s32.f32 %v285
        %v288 = vstv %s259
        %v289 = vsub.f32 %v282, %v288
        %v290 = vsub.f32 %v283, %v288
        %v291 = vstv %s257
        %v292 = vmul.f32 %v289, %v291
        %v293 = vmul.f32 %v290, %v291
        %v295 = vlaneseq
        %v296 = vshrl.u32 %v295, 7
        %v297 = vsub.s32 0, %v296
        %v298 = vrot.slane %v271, %v297
        %v299 = vlaneseq
        %v300 = vshrl.u32 %v299, 7
        %v301 = vsub.s32 1, %v300
        %v302 = vrot.slane %v271, %v301
        %v305 = vmul.f32 %v292, %v298
        %v306 = vmul.f32 %v293, %v302
        %v307 = vstv %s260
        %v308 = vsub.f32 %v286, %v307
        %v309 = vsub.f32 %v287, %v307
        %v310 = vstv %s258
        %v311 = vmul.f32 %v308, %v310
        %v312 = vmul.f32 %v309, %v310
        %v313 = vmul.f32 %v311, %v298
        %v314 = vmul.f32 %v312, %v302
        %v315 = vmul.f32 %v305, %v305
        %v316 = vmul.f32 %v306, %v306
        %v317 = vmul.f32 %v313, %v313
        %v318 = vmul.f32 %v314, %v314
        %v319 = vadd.f32 %v315, %v317
        %v320 = vadd.f32 %v316, %v318
        %v321 = vmul.f32 %v271, %v271
        %v323 = vlaneseq
        %v324 = vshrl.u32 %v323, 7
        %v325 = vsub.s32 0, %v324
        %v326 = vrot.slane %v321, %v325
        %v327 = vlaneseq
        %v328 = vshrl.u32 %v327, 7
        %v329 = vsub.s32 1, %v328
        %v330 = vrot.slane %v321, %v329
        %v333 = vadd.f32 %v319, %v326
        %v334 = vadd.f32 %v320, %v330
        %v335 = vrsqrt.pop %v333
        %v336 = vmul.f32 %v333, %v335
        %vm337 = vcmp.eq.f32.partialorder %v333, inf
        %v338 = vsel %vm337, %v333, %v336
        %vm339 = vcmp.eq.f32.partialorder %v333, 0.0
        %v340 = vand.u32 %v333, 2147483648
        %v341 = vsel %vm339, %v340, %v338
        %v342 = vrsqrt.pop %v334
        %v343 = vmul.f32 %v334, %v342
        %vm344 = vcmp.eq.f32.partialorder %v334, inf
        %v345 = vsel %vm344, %v334, %v343
        %vm346 = vcmp.eq.f32.partialorder %v334, 0.0
        %v347 = vand.u32 %v334, 2147483648
        %v348 = vsel %vm346, %v347, %v345
        %v349 = vmax.f32 %v333, 1e-12
        %v350 = vmax.f32 %v334, 1e-12
        %v351 = vrsqrt.pop %v349
        %v352 = vrsqrt.pop %v350
        %v353 = vmul.f32 %v272, %v272
        %v355 = vrot.slane %v353, 5
        %v356 = vrot.slane %v355, 4
        %v358 = vadd.f32 %v353, %v356
        %v359 = vrot.slane %v353, 6
        %v360 = vrot.slane %v359, 4
        %v362 = vadd.f32 %v358, %v360
        %v363 = vmax.f32 %v362, 1e-12
        %v364 = vrsqrt.pop %v363
        %v367 = vcombine.low %v305, %v306
        %v369 = vmul.f32 %v272, %v367
        %v372 = vcombine.low %v313, %v314
        %v373 = vrot.slane %v372, 7
        %v375 = vmul.f32 %v272, %v373
        %v377 = vrot.slane %v375, 5
        %v378 = vrot.slane %v377, 4
        %v380 = vadd.f32 %v369, %v378
        %v382 = vunpack.c.l.s4 286326784
        %v383 = vunpack.c.0.s8 %v382
        %v384 = vlaneseq
        %v385 = vshrl.u32 %v384, 7
        %v386 = vsub.s32 %v383, %v385
        %v387 = vrot.slane %v271, %v386
        %v389 = vmul.f32 %v272, %v387
        %v391 = vrot.slane %v389, 6
        %v392 = vrot.slane %v391, 4
        %v394 = vadd.f32 %v380, %v392
        %v397 = vcombine.low %v351, %v352
        %v399 = vmul.f32 %v364, %v397
        %v400 = vmul.f32 %v394, %v399
        %v401 = vmax.f32 %v400, 0.0
        %v402 = vmul.f32 %v401, %v401
        %v403 = vmul.f32 %v402, %v402
        %v404 = vmul.f32 %v403, %v403
        %v405 = vmul.f32 %v404, %v404
        %v406 = vmul.f32 %v405, %v405
        %v407 = vstv %s261
        %v408 = vmul.f32 %v407, %v341
        %v409 = vmul.f32 %v407, %v348
        %v410 = vadd.f32 %v408, 1.0
        %v411 = vadd.f32 %v409, 1.0
        %v412 = vrcp.pop %v410
        %v413 = vmul.f32 1.0, %v412
        %v414 = vrcp.pop %v411
        %v415 = vmul.f32 1.0, %v414
        %v416 = vmax.f32 %v413, 0.0
        %v417 = vmax.f32 %v415, 0.0
        %v418 = vmin.f32 %v416, 1.0
        %v419 = vmin.f32 %v417, 1.0
        %v421 = vlaneseq
        %v422 = vshrl.u32 %v421, 7
        %v423 = vsub.s32 0, %v422
        %v424 = vrot.slane %v401, %v423
        %v425 = vlaneseq
        %v426 = vshrl.u32 %v425, 7
        %v427 = vsub.s32 4, %v426
        %v428 = vrot.slane %v401, %v427
        %v431 = vmul.f32 %v418, %v424
        %v432 = vmul.f32 %v419, %v428
        %v434 = vlaneseq
        %v435 = vshrl.u32 %v434, 7
        %v436 = vsub.s32 0, %v435
        %v437 = vrot.slane %v406, %v436
        %v438 = vlaneseq
        %v439 = vshrl.u32 %v438, 7
        %v440 = vsub.s32 4, %v439
        %v441 = vrot.slane %v406, %v440
        %v444 = vmul.f32 %v418, %v437
        %v445 = vmul.f32 %v419, %v441
        %v446 = vstv %s262
        %v447 = vmul.f32 %v418, %v446
        %v448 = vmul.f32 %v419, %v446
        %v449 = vstv %s265
        %v450 = vmul.f32 %v431, %v449
        %v451 = vmul.f32 %v432, %v449
        %v452 = vadd.f32 %v447, %v450
        %v453 = vadd.f32 %v448, %v451
        %v454 = vstv %s268
        %v455 = vmul.f32 %v444, %v454
        %v456 = vmul.f32 %v445, %v454
        %v457 = vadd.f32 %v452, %v455
        %v458 = vadd.f32 %v453, %v456
        %v461 = vcombine.low %v457, %v458
        %v463 = vunpack.c.l.s4 1966171168
        %v464 = vunpack.c.0.s8 %v463
        %v465 = vlaneseq
        %v466 = vshrl.u32 %v465, 7
        %v467 = vsub.s32 %v464, %v466
        %v468 = vrot.slane %v461, %v467
        %v470 = vunpack.c.l.s4 1966171168
        %v471 = vunpack.c.0.s8 %v470
        %v472 = vlaneseq
        %v473 = vshrl.u32 %v472, 7
        %v474 = vsub.s32 %v471, %v473
        %v475 = vrot.slane %v468, %v474
        %v477 = vlaneseq
        %vm478 = vcmp.ge.s32.totalorder %v477, 0
        %vm479 = vcmp.lt.s32.totalorder %v477, 256
        %vm480 = vmand %vm478, %vm479
        %481 = vst.msk [vmem:[%s255] ss:$4 sm:$0x3] %vm480, %v475
        %v482 = vstv %s263
        %v483 = vmul.f32 %v418, %v482
        %v484 = vmul.f32 %v419, %v482
        %v485 = vstv %s266
        %v486 = vmul.f32 %v431, %v485
        %v487 = vmul.f32 %v432, %v485
        %v488 = vadd.f32 %v483, %v486
        %v489 = vadd.f32 %v484, %v487
        %v490 = vstv %s269
        %v491 = vmul.f32 %v444, %v490
        %v492 = vmul.f32 %v445, %v490
        %v493 = vadd.f32 %v488, %v491
        %v494 = vadd.f32 %v489, %v492
        %v497 = vcombine.low %v493, %v494
        %v499 = vunpack.c.l.s4 1966171168
        %v500 = vunpack.c.0.s8 %v499
        %v501 = vlaneseq
        %v502 = vshrl.u32 %v501, 7
        %v503 = vsub.s32 %v500, %v502
        %v504 = vrot.slane %v497, %v503
        %v506 = vunpack.c.l.s4 1966171168
        %v507 = vunpack.c.0.s8 %v506
        %v508 = vlaneseq
        %v509 = vshrl.u32 %v508, 7
        %v510 = vsub.s32 %v507, %v509
        %v511 = vrot.slane %v504, %v510
        %s513 = scalar_lea.vmem %s255, 1
        %514 = vst.msk [vmem:[%s513] ss:$4 sm:$0x3] %vm480, %v511
        %v515 = vstv %s264
        %v516 = vmul.f32 %v418, %v515
        %v517 = vmul.f32 %v419, %v515
        %v518 = vstv %s267
        %v519 = vmul.f32 %v431, %v518
        %v520 = vmul.f32 %v432, %v518
        %v521 = vadd.f32 %v516, %v519
        %v522 = vadd.f32 %v517, %v520
        %v523 = vstv %s270
        %v524 = vmul.f32 %v444, %v523
        %v525 = vmul.f32 %v445, %v523
        %v526 = vadd.f32 %v521, %v524
        %v527 = vadd.f32 %v522, %v525
        %v530 = vcombine.low %v526, %v527
        %v532 = vunpack.c.l.s4 1966171168
        %v533 = vunpack.c.0.s8 %v532
        %v534 = vlaneseq
        %v535 = vshrl.u32 %v534, 7
        %v536 = vsub.s32 %v533, %v535
        %v537 = vrot.slane %v530, %v536
        %v539 = vunpack.c.l.s4 1966171168
        %v540 = vunpack.c.0.s8 %v539
        %v541 = vlaneseq
        %v542 = vshrl.u32 %v541, 7
        %v543 = vsub.s32 %v540, %v542
        %v544 = vrot.slane %v537, %v543
        %s546 = scalar_lea.vmem %s255, 2
        %547 = vst.msk [vmem:[%s546] ss:$4 sm:$0x3] %vm480, %v544
        %s548 = smul.u32 2, %s20
        %p549 = scmp.lt.s32.totalorder %s19, 1
        %s550 = scalar_select %p549, %s19, 1
        %p551 = scmp.lt.s32.totalorder %s548, 1
        %s552 = scalar_select %p551, %s548, 1
        %s553 = smul.addr %s550, 2
        %s554 = sadd.s32 %s552, %s553
        %s555 = smul.addr %s554, 4
        %s556 = scalar_lea.vmem %s3, %s555
        // Predicated region
        $region37: #{tpu_custom_call.1} parent=31 // pred_check
          %p557 = pneg %p124
        $region38: #{tpu_custom_call.1} parent=31 // pred_check_branch
          %559 = sbr.rel (%p557) target = $region40
        $region39: #{tpu_custom_call.1} parent=31 // pred_region
          %s560 = smul.u32 2, %s20
        $region40: #{tpu_custom_call.1} parent=31 // pred_fallthru
          _
      $region32: #{tpu_custom_call.1} parent=5 // pred_fallthru
        _
      %p561 = scmp.le.s32.totalorder 2, %s10
      // Predicated region
      $region41: #{tpu_custom_call.1} parent=5 // pred_check
        %p562 = pneg %p561
      $region42: #{tpu_custom_call.1} parent=5 // pred_check_branch
        %564 = sbr.rel (%p562) target = $region44
      $region43: #{tpu_custom_call.1} parent=5 // pred_region
        %s565 = ssub.s32 %s10, 2
        // Predicated region
        $region45: #{tpu_custom_call.1} parent=43 // pred_check
          %p566 = pneg %p130
        $region46: #{tpu_custom_call.1} parent=43 // pred_check_branch
          %568 = sbr.rel (%p566) target = $region48
        $region47: #{tpu_custom_call.1} parent=43 // pred_region
          %s569 = smul.u32 2, %s22
          %p570 = scmp.lt.s32.totalorder %s21, 1
          %s571 = scalar_select %p570, %s21, 1
          %p572 = scmp.lt.s32.totalorder %s569, 1
          %s573 = scalar_select %p572, %s569, 1
          %s574 = smul.addr %s571, 2
          %s575 = sadd.s32 %s573, %s574
          %s576 = smul.addr %s575, 4
          %s577 = scalar_lea.vmem %s3, %s576
        $region48: #{tpu_custom_call.1} parent=43 // pred_fallthru
          _
      $region44: #{tpu_custom_call.1} parent=5 // pred_fallthru
        _
    $region6: #{tpu_custom_call.1} parent=1 // loop_footer
      %s14 = sadd.s32 1, %s10
    $region7: #{tpu_custom_call.1} parent=1 // loop_footer_branch
      %9 = sbr.rel target = $region3
    $region8: #{tpu_custom_call.1} parent=1 // loop_exit
      _
    %578 = vsyncpa [#allocation3], 1
    %s579 = scalar_lea.sflag [#allocation3], 1
    %580 = vsyncpa %s579, 1

</llo_original>
